<compile_context>
chip_gen: v6e
topology: v6e:2x2x1
jax: 0.10.0
libtpu: 0.0.40
codegen_flags: <defaults>
</compile_context>

<pallas_src>
import jax
import jax.numpy as jnp
from jax.experimental import pallas as pl
from jax.experimental.pallas import tpu as pltpu


def fcnn_kernel(t_ref, w0_ref, b0_ref, w1_ref, b1_ref, w2_ref, b2_ref, o_ref):
    # t_ref : (n_in, tile_b)         batch on lanes (lane-dense)
    # w0_ref: (n_hidden, n_in)       b0_ref: (n_hidden, 1)
    # w1_ref: (n_hidden, n_hidden)   b1_ref: (n_hidden, 1)
    # w2_ref: (1, n_hidden)          b2_ref: (1,) scalar in SMEM
    # o_ref : (1, tile_b)
    n_in = w0_ref.shape[1]

    # --- layer 1: Linear(n_in, n_hidden) + Tanh --------------------------
    # K = n_in is tiny (1 by default): a K=1 MXU matmul wastes the systolic
    # array, so do a broadcast multiply-add on the VPU instead.
    if n_in <= 8:
        pre = w0_ref[:, 0:1] * t_ref[0:1, :]
        for k in range(1, n_in):
            pre = pre + w0_ref[:, k:k + 1] * t_ref[k:k + 1, :]
    else:
        pre = jnp.dot(w0_ref[...], t_ref[...], preferred_element_type=jnp.float32)
    h = jnp.tanh(pre + b0_ref[...])                           # (n_hidden, tile_b)

    # --- layer 2: Linear(n_hidden, n_hidden) + Tanh -----------------------
    # Lane-dense MXU matmul: N = tile_b (multiple of 128).
    h = jnp.tanh(
        jnp.dot(w1_ref[...], h, preferred_element_type=jnp.float32) + b1_ref[...]
    )

    # --- output layer: Linear(n_hidden, 1), no activation ------------------
    # (1, n_hidden) @ (n_hidden, tile_b) stays lane-dense.
    out = jnp.dot(w2_ref[...], h, preferred_element_type=jnp.float32) + b2_ref[0]
    o_ref[...] = out.astype(o_ref.dtype)


def _default_tile_b(batch):
    """Lane-dense batch tile: multiple of 128 that divides batch; prefer >= 2
    grid steps so v7x's two TensorCores both get work."""
    if batch % 256 == 0 and batch >= 256:
        tile = min(1024, batch // 2)
        while batch % tile != 0:
            tile //= 2
        return tile
    return batch


def fcnn_forward(t, params, *, tile_b=None):
    """t: (batch, n_in) float32 -> (batch, 1) float32.

    Params are in PyTorch layout: w (out, in), b (out,)."""
    w0, b0, w1, b1, w2, b2 = params
    batch, n_in = t.shape
    n_hidden = w0.shape[0]
    assert batch % 128 == 0, "batch must be a multiple of 128 (lane-dense tiling)"
    if tile_b is None:
        tile_b = _default_tile_b(batch)
    assert batch % tile_b == 0 and tile_b % 128 == 0

    # Feature-major layout: batch on the lane axis (cheap: n_in == out == 1
    # makes these effectively reshapes).
    t_t = t.T                                   # (n_in, batch)
    b0c = b0.reshape(n_hidden, 1).astype(jnp.float32)
    b1c = b1.reshape(n_hidden, 1).astype(jnp.float32)
    b2s = b2.reshape(1).astype(jnp.float32)     # SMEM scalar

    grid = (batch // tile_b,)
    full = lambda shape: pl.BlockSpec(shape, lambda i: (0, 0))

    out_t = pl.pallas_call(
        fcnn_kernel,
        out_shape=jax.ShapeDtypeStruct((1, batch), jnp.float32),
        grid_spec=pltpu.PrefetchScalarGridSpec(
            num_scalar_prefetch=0,
            grid=grid,
            in_specs=[
                pl.BlockSpec((n_in, tile_b), lambda i: (0, i)),     # t (transposed)
                full((n_hidden, n_in)),                             # w0
                full((n_hidden, 1)),                                # b0
                full((n_hidden, n_hidden)),                         # w1
                full((n_hidden, 1)),                                # b1
                full((1, n_hidden)),                                # w2
                pl.BlockSpec(memory_space=pltpu.MemorySpace.SMEM),  # b2 scalar
            ],
            out_specs=pl.BlockSpec((1, tile_b), lambda i: (0, i)),
        ),
        compiler_params=pltpu.CompilerParams(
            dimension_semantics=("parallel",),
        ),
    )(t_t, w0, b0c, w1, b1c, w2, b2s)

    return out_t.T                              # (batch, 1)


def init_params(key, n_input_units=1, n_hidden_units=32):
    """Deterministic init mimicking PyTorch's U(-1/sqrt(fan_in), 1/sqrt(fan_in)).

    Weights stored PyTorch-style: (out_features, in_features)."""
    ks = jax.random.split(key, 6)

    def uniform(k, shape, fan_in):
        bound = 1.0 / jnp.sqrt(jnp.float32(fan_in))
        return jax.random.uniform(
            k, shape, dtype=jnp.float32, minval=-bound, maxval=bound
        )

    w0 = uniform(ks[0], (n_hidden_units, n_input_units), n_input_units)
    b0 = uniform(ks[1], (n_hidden_units,), n_input_units)
    w1 = uniform(ks[2], (n_hidden_units, n_hidden_units), n_hidden_units)
    b1 = uniform(ks[3], (n_hidden_units,), n_hidden_units)
    w2 = uniform(ks[4], (1, n_hidden_units), n_hidden_units)
    b2 = uniform(ks[5], (1,), n_hidden_units)
    return (w0, b0, w1, b1, w2, b2)


def fcnn_reference(t, params):
    w0, b0, w1, b1, w2, b2 = params
    h = jnp.tanh(t @ w0.T + b0)
    h = jnp.tanh(h @ w1.T + b1)
    return h @ w2.T + b2


if __name__ == "__main__":
    key = jax.random.PRNGKey(0)
    k_x, k_p = jax.random.split(key)

    batch, n_input, n_hidden = 512, 1, 32
    t = jax.random.normal(k_x, (batch, n_input), dtype=jnp.float32)
    params = init_params(k_p, n_input_units=n_input, n_hidden_units=n_hidden)

    out = fcnn_forward(t, params)     # default tile_b=256 -> grid=(2,)
    out = jax.block_until_ready(out)

    ref = fcnn_reference(t, params)
    assert out.shape == (batch, 1)
    assert jnp.allclose(out, ref, atol=2e-5, rtol=2e-5), float(
        jnp.max(jnp.abs(out - ref))
    )

    print("KERNEL_OK")
</pallas_src>

<mosaic_0001>
module attributes {stable_mosaic.version = 11 : i64} {
  func.func @fcnn_kernel(%arg0: i32, %arg1: memref<1x256xf32, #tpu.memory_space<vmem>>, %arg2: memref<32x1xf32, #tpu.memory_space<vmem>>, %arg3: memref<32x1xf32, #tpu.memory_space<vmem>>, %arg4: memref<32x32xf32, #tpu.memory_space<vmem>>, %arg5: memref<32x1xf32, #tpu.memory_space<vmem>>, %arg6: memref<1x32xf32, #tpu.memory_space<vmem>>, %arg7: memref<1xf32, #tpu.memory_space<smem>>, %arg8: memref<1x256xf32, #tpu.memory_space<vmem>>) attributes {dimension_semantics = [#tpu.dimension_semantics<parallel>], iteration_bounds = array<i64: 2>, scalar_prefetch = 0 : i64, scratch_operands = 0 : i64, tpu.core_type = #tpu.core_type<tc>, window_params = [{transform_indices = @transform_0, window_bounds = array<i64: 1, 256>}, {pipeline_mode = #tpu.pipeline_mode<synchronous>, transform_indices = @transform_1, window_bounds = array<i64: 32, 1>}, {pipeline_mode = #tpu.pipeline_mode<synchronous>, transform_indices = @transform_2, window_bounds = array<i64: 32, 1>}, {pipeline_mode = #tpu.pipeline_mode<synchronous>, transform_indices = @transform_3, window_bounds = array<i64: 32, 32>}, {pipeline_mode = #tpu.pipeline_mode<synchronous>, transform_indices = @transform_4, window_bounds = array<i64: 32, 1>}, {pipeline_mode = #tpu.pipeline_mode<synchronous>, transform_indices = @transform_5, window_bounds = array<i64: 1, 32>}, {transform_indices = @transform_6, window_bounds = array<i64: 1>}, {transform_indices = @transform_7, window_bounds = array<i64: 1, 256>}]} {
    %c0 = arith.constant 0 : index
    %c0_0 = arith.constant 0 : index
    %0 = vector.load %arg2[%c0, %c0_0] : memref<32x1xf32, #tpu.memory_space<vmem>>, vector<32x1xf32>
    %c0_1 = arith.constant 0 : index
    %c0_2 = arith.constant 0 : index
    %1 = vector.load %arg1[%c0_1, %c0_2] : memref<1x256xf32, #tpu.memory_space<vmem>>, vector<1x256xf32>
    %2 = vector.broadcast %0 : vector<32x1xf32> to vector<32x256xf32>
    %3 = vector.broadcast %1 : vector<1x256xf32> to vector<32x256xf32>
    %4 = arith.mulf %2, %3 : vector<32x256xf32>
    %c0_3 = arith.constant 0 : index
    %c0_4 = arith.constant 0 : index
    %5 = vector.load %arg3[%c0_3, %c0_4] : memref<32x1xf32, #tpu.memory_space<vmem>>, vector<32x1xf32>
    %6 = vector.broadcast %5 : vector<32x1xf32> to vector<32x256xf32>
    %7 = arith.addf %4, %6 : vector<32x256xf32>
    %8 = math.tanh %7 : vector<32x256xf32>
    %c0_5 = arith.constant 0 : index
    %c0_6 = arith.constant 0 : index
    %9 = vector.load %arg4[%c0_5, %c0_6] : memref<32x32xf32, #tpu.memory_space<vmem>>, vector<32x32xf32>
    %cst = arith.constant dense<0.000000e+00> : vector<32x256xf32>
    %10 = tpu.matmul %9, %8, %cst {dimension_numbers = #tpu.dot_dimension_numbers<[1], [0], [0], [1], [0, 0, 1, 1], [], []>} : vector<32x32xf32>, vector<32x256xf32>, vector<32x256xf32> -> vector<32x256xf32>
    %c0_7 = arith.constant 0 : index
    %c0_8 = arith.constant 0 : index
    %11 = vector.load %arg5[%c0_7, %c0_8] : memref<32x1xf32, #tpu.memory_space<vmem>>, vector<32x1xf32>
    %12 = vector.broadcast %11 : vector<32x1xf32> to vector<32x256xf32>
    %13 = arith.addf %10, %12 : vector<32x256xf32>
    %14 = math.tanh %13 : vector<32x256xf32>
    %c0_9 = arith.constant 0 : index
    %c0_10 = arith.constant 0 : index
    %15 = vector.load %arg6[%c0_9, %c0_10] : memref<1x32xf32, #tpu.memory_space<vmem>>, vector<1x32xf32>
    %cst_11 = arith.constant dense<0.000000e+00> : vector<1x256xf32>
    %16 = tpu.matmul %15, %14, %cst_11 {dimension_numbers = #tpu.dot_dimension_numbers<[1], [0], [0], [1], [0, 0, 1, 1], [], []>} : vector<1x32xf32>, vector<32x256xf32>, vector<1x256xf32> -> vector<1x256xf32>
    %c0_12 = arith.constant 0 : index
    %17 = memref.load %arg7[%c0_12] : memref<1xf32, #tpu.memory_space<smem>>
    %18 = vector.broadcast %17 : f32 to vector<1x256xf32>
    %19 = arith.addf %16, %18 : vector<1x256xf32>
    %c0_13 = arith.constant 0 : index
    %c0_14 = arith.constant 0 : index
    %20 = vector.load %arg8[%c0_13, %c0_14] : memref<1x256xf32, #tpu.memory_space<vmem>>, vector<1x256xf32>
    tpu.vector_store %arg8[%c0_13, %c0_14], %19 {strides = array<i32>} : memref<1x256xf32, #tpu.memory_space<vmem>>, vector<1x256xf32>,
    return
  }
  func.func @transform_0(%arg0: i32) -> (i32, i32) {
    %c0_i32 = arith.constant 0 : i32
    %c0_i32_0 = arith.constant 0 : i32
    return %c0_i32, %arg0 : i32, i32
  }
  func.func @transform_1(%arg0: i32) -> (i32, i32) {
    %c0_i32 = arith.constant 0 : i32
    %c0_i32_0 = arith.constant 0 : i32
    %c0_i32_1 = arith.constant 0 : i32
    return %c0_i32, %c0_i32_0 : i32, i32
  }
  func.func @transform_2(%arg0: i32) -> (i32, i32) {
    %c0_i32 = arith.constant 0 : i32
    %c0_i32_0 = arith.constant 0 : i32
    %c0_i32_1 = arith.constant 0 : i32
    return %c0_i32, %c0_i32_0 : i32, i32
  }
  func.func @transform_3(%arg0: i32) -> (i32, i32) {
    %c0_i32 = arith.constant 0 : i32
    %c0_i32_0 = arith.constant 0 : i32
    %c0_i32_1 = arith.constant 0 : i32
    return %c0_i32, %c0_i32_0 : i32, i32
  }
  func.func @transform_4(%arg0: i32) -> (i32, i32) {
    %c0_i32 = arith.constant 0 : i32
    %c0_i32_0 = arith.constant 0 : i32
    %c0_i32_1 = arith.constant 0 : i32
    return %c0_i32, %c0_i32_0 : i32, i32
  }
  func.func @transform_5(%arg0: i32) -> (i32, i32) {
    %c0_i32 = arith.constant 0 : i32
    %c0_i32_0 = arith.constant 0 : i32
    %c0_i32_1 = arith.constant 0 : i32
    return %c0_i32, %c0_i32_0 : i32, i32
  }
  func.func @transform_6(%arg0: i32) -> i32 {
    %c0_i32 = arith.constant 0 : i32
    %c0_i32_0 = arith.constant 0 : i32
    return %c0_i32 : i32
  }
  func.func @transform_7(%arg0: i32) -> (i32, i32) {
    %c0_i32 = arith.constant 0 : i32
    %c0_i32_0 = arith.constant 0 : i32
    return %c0_i32, %arg0 : i32, i32
  }
}

</mosaic_0001>

<llo_original>
// kernel: tpu_custom_call.1
$region0: #{tpu_custom_call.1}
  #allocation0 [shape = 'u32[]', space=smem, size = 0x4, offset = 0x4, fixed_abs, tag = 'smem constant byte address 0x4 - core index']
  #allocation1 [shape = 'u32[144,128]{1,0:T(1,128)}', space=vmem, size = 0x12000, scoped, tag = 'internal scratch']
  #allocation2 [shape = 'f32[1]{0:T(128)S(6)}', space=smem, size = 0x200, scoped, tag = 'scoped memory for tpu_custom_call.1']
  %s0 = inlined_call_operand.vmem [shape: f32[1,512], index: 0, kind: input, shape index: {}]
  %s1 = inlined_call_operand.vmem [shape: f32[32,1], index: 1, kind: input, shape index: {}]
  %s2 = inlined_call_operand.vmem [shape: f32[32,1], index: 2, kind: input, shape index: {}]
  %s3 = inlined_call_operand.vmem [shape: f32[32,32], index: 3, kind: input, shape index: {}]
  %s4 = inlined_call_operand.vmem [shape: f32[32,1], index: 4, kind: input, shape index: {}]
  %s5 = inlined_call_operand.vmem [shape: f32[1,32], index: 5, kind: input, shape index: {}]
  %s6 = inlined_call_operand.<no memory space> [shape: f32[1], index: 6, kind: input, shape index: {}]
  %s7 = inlined_call_operand.hbm [shape: f32[1,512], index: 7, kind: output, shape index: {}]
  %s8 = sld [smem:[#allocation0]]
  $region61: #{tpu_custom_call.1} parent=0
    _
  %s10 = ssub.s32 1, %s8
  %s11 = scalar_select 0, %s10, %s8
  %12 = sst [smem:[#allocation2]] %s6
  $region1: #{tpu_custom_call.1} parent=0
    #allocation3 [shape = 'u8[2048]{0}', space=vmem, size = 0x800, scoped, tag = 'output window, operand 0']
    #allocation4 [shape = 's32[2]{0}', space=sflag, size = 0x8, scoped, tag = 'scoped memory for tpu_custom_call.1']
    %13 = vsyncpa [#allocation4], 0
    %s14 = scalar_lea.sflag [#allocation4], 1
    %15 = vsyncpa %s14, 0
    loop: start=0, step=1, limit=4
    $region2: #{tpu_custom_call.1} parent=1 // loop_pre_header
      _
    $region3: #{tpu_custom_call.1} parent=1 // loop_header
      %s17 = sphi 0, %s21
      %p18 = scmp.ge.s32.totalorder %s17, 4
      %s27 = sphi 0, %s29
      %s30 = sphi 0, %s27
      %s31 = sphi 0, %s30
      %s47 = sphi 0, %s31
      %s51 = sphi 0, %s51
      %s53 = sphi 0, %s51
      %s54 = sphi 0, %s53
      %s68 = sphi 0, %s54
      %s72 = sphi 0, %s72
      %s74 = sphi 0, %s72
      %s75 = sphi 0, %s74
      %s89 = sphi 0, %s75
      %s93 = sphi 0, %s93
      %s95 = sphi 0, %s93
      %s96 = sphi 0, %s95
      %s110 = sphi 0, %s96
      %s114 = sphi 0, %s114
      %s116 = sphi 0, %s114
      %s117 = sphi 0, %s116
      %s131 = sphi 0, %s117
      %s135 = sphi 0, %s135
      %s137 = sphi 0, %s135
      %s138 = sphi 0, %s137
      %s152 = sphi 0, %s138
      %s156 = sphi 0, %s156
      %s158 = sphi 0, %s156
      %s159 = sphi 0, %s158
      %s173 = sphi 0, %s159
      %s179 = sphi 0, %s181
      %s182 = sphi 0, %s179
      %s183 = sphi 0, %s182
      %s199 = sphi 0, %s183
    $region4: #{tpu_custom_call.1} parent=1 // loop_header_branch
      %20 = sbr.rel (%p18) target = $region8
    $region5: #{tpu_custom_call.1} parent=1 // loop_body
      %s22 = ssub.s32 %s17, 1
      %s23 = ssub.s32 %s17, 2
      %s24 = sadd.s32 %s17, 1
      %s25 = ssub.s32 %s17, %s24
      %p26 = scmp.eq.s32.totalorder %s25, 0
      %s28 = sadd.s32 %s27, 1
      %s29 = scalar_select %p26, %s27, %s28
      %p32 = pneg %p26
      %p33 = scmp.eq.s32.totalorder %s17, 1
      %p34 = por %p32, %p33
      %p35 = scmp.ne.s32.totalorder %s27, %s30
      %p36 = scmp.eq.s32.totalorder %s17, 0
      %p37 = por %p35, %p36
      %p38 = scmp.ne.s32.totalorder %s27, %s30
      %p39 = scmp.eq.s32.totalorder %s22, 1
      %p40 = por %p38, %p39
      %p41 = scmp.ne.s32.totalorder %s30, %s31
      %p42 = scmp.eq.s32.totalorder %s22, 0
      %p43 = por %p41, %p42
      %p44 = scmp.ne.s32.totalorder %s30, %s31
      %p45 = scmp.eq.s32.totalorder %s23, 1
      %p46 = por %p44, %p45
      %p48 = scmp.ne.s32.totalorder %s31, %s47
      %p49 = scmp.eq.s32.totalorder %s23, 0
      %p50 = por %p48, %p49
      %s52 = sadd.s32 %s51, 1
      %p55 = scmp.eq.s32.totalorder %s17, 1
      %p56 = scmp.ne.s32.totalorder %s51, %s53
      %p57 = scmp.eq.s32.totalorder %s17, 0
      %p58 = por %p56, %p57
      %p59 = scmp.ne.s32.totalorder %s51, %s53
      %p60 = scmp.eq.s32.totalorder %s22, 1
      %p61 = por %p59, %p60
      %p62 = scmp.ne.s32.totalorder %s53, %s54
      %p63 = scmp.eq.s32.totalorder %s22, 0
      %p64 = por %p62, %p63
      %p65 = scmp.ne.s32.totalorder %s53, %s54
      %p66 = scmp.eq.s32.totalorder %s23, 1
      %p67 = por %p65, %p66
      %p69 = scmp.ne.s32.totalorder %s54, %s68
      %p70 = scmp.eq.s32.totalorder %s23, 0
      %p71 = por %p69, %p70
      %s73 = sadd.s32 %s72, 1
      %p76 = scmp.eq.s32.totalorder %s17, 1
      %p77 = scmp.ne.s32.totalorder %s72, %s74
      %p78 = scmp.eq.s32.totalorder %s17, 0
      %p79 = por %p77, %p78
      %p80 = scmp.ne.s32.totalorder %s72, %s74
      %p81 = scmp.eq.s32.totalorder %s22, 1
      %p82 = por %p80, %p81
      %p83 = scmp.ne.s32.totalorder %s74, %s75
      %p84 = scmp.eq.s32.totalorder %s22, 0
      %p85 = por %p83, %p84
      %p86 = scmp.ne.s32.totalorder %s74, %s75
      %p87 = scmp.eq.s32.totalorder %s23, 1
      %p88 = por %p86, %p87
      %p90 = scmp.ne.s32.totalorder %s75, %s89
      %p91 = scmp.eq.s32.totalorder %s23, 0
      %p92 = por %p90, %p91
      %s94 = sadd.s32 %s93, 1
      %p97 = scmp.eq.s32.totalorder %s17, 1
      %p98 = scmp.ne.s32.totalorder %s93, %s95
      %p99 = scmp.eq.s32.totalorder %s17, 0
      %p100 = por %p98, %p99
      %p101 = scmp.ne.s32.totalorder %s93, %s95
      %p102 = scmp.eq.s32.totalorder %s22, 1
      %p103 = por %p101, %p102
      %p104 = scmp.ne.s32.totalorder %s95, %s96
      %p105 = scmp.eq.s32.totalorder %s22, 0
      %p106 = por %p104, %p105
      %p107 = scmp.ne.s32.totalorder %s95, %s96
      %p108 = scmp.eq.s32.totalorder %s23, 1
      %p109 = por %p107, %p108
      %p111 = scmp.ne.s32.totalorder %s96, %s110
      %p112 = scmp.eq.s32.totalorder %s23, 0
      %p113 = por %p111, %p112
      %s115 = sadd.s32 %s114, 1
      %p118 = scmp.eq.s32.totalorder %s17, 1
      %p119 = scmp.ne.s32.totalorder %s114, %s116
      %p120 = scmp.eq.s32.totalorder %s17, 0
      %p121 = por %p119, %p120
      %p122 = scmp.ne.s32.totalorder %s114, %s116
      %p123 = scmp.eq.s32.totalorder %s22, 1
      %p124 = por %p122, %p123
      %p125 = scmp.ne.s32.totalorder %s116, %s117
      %p126 = scmp.eq.s32.totalorder %s22, 0
      %p127 = por %p125, %p126
      %p128 = scmp.ne.s32.totalorder %s116, %s117
      %p129 = scmp.eq.s32.totalorder %s23, 1
      %p130 = por %p128, %p129
      %p132 = scmp.ne.s32.totalorder %s117, %s131
      %p133 = scmp.eq.s32.totalorder %s23, 0
      %p134 = por %p132, %p133
      %s136 = sadd.s32 %s135, 1
      %p139 = scmp.eq.s32.totalorder %s17, 1
      %p140 = scmp.ne.s32.totalorder %s135, %s137
      %p141 = scmp.eq.s32.totalorder %s17, 0
      %p142 = por %p140, %p141
      %p143 = scmp.ne.s32.totalorder %s135, %s137
      %p144 = scmp.eq.s32.totalorder %s22, 1
      %p145 = por %p143, %p144
      %p146 = scmp.ne.s32.totalorder %s137, %s138
      %p147 = scmp.eq.s32.totalorder %s22, 0
      %p148 = por %p146, %p147
      %p149 = scmp.ne.s32.totalorder %s137, %s138
      %p150 = scmp.eq.s32.totalorder %s23, 1
      %p151 = por %p149, %p150
      %p153 = scmp.ne.s32.totalorder %s138, %s152
      %p154 = scmp.eq.s32.totalorder %s23, 0
      %p155 = por %p153, %p154
      %s157 = sadd.s32 %s156, 1
      %p160 = scmp.eq.s32.totalorder %s17, 1
      %p161 = scmp.ne.s32.totalorder %s156, %s158
      %p162 = scmp.eq.s32.totalorder %s17, 0
      %p163 = por %p161, %p162
      %p164 = scmp.ne.s32.totalorder %s156, %s158
      %p165 = scmp.eq.s32.totalorder %s22, 1
      %p166 = por %p164, %p165
      %p167 = scmp.ne.s32.totalorder %s158, %s159
      %p168 = scmp.eq.s32.totalorder %s22, 0
      %p169 = por %p167, %p168
      %p170 = scmp.ne.s32.totalorder %s158, %s159
      %p171 = scmp.eq.s32.totalorder %s23, 1
      %p172 = por %p170, %p171
      %p174 = scmp.ne.s32.totalorder %s159, %s173
      %p175 = scmp.eq.s32.totalorder %s23, 0
      %p176 = por %p174, %p175
      %s177 = ssub.s32 %s17, %s24
      %p178 = scmp.eq.s32.totalorder %s177, 0
      %s180 = sadd.s32 %s179, 1
      %s181 = scalar_select %p178, %s179, %s180
      %p184 = pneg %p178
      %p185 = scmp.eq.s32.totalorder %s17, 1
      %p186 = por %p184, %p185
      %p187 = scmp.ne.s32.totalorder %s179, %s182
      %p188 = scmp.eq.s32.totalorder %s17, 0
      %p189 = por %p187, %p188
      %p190 = scmp.ne.s32.totalorder %s179, %s182
      %p191 = scmp.eq.s32.totalorder %s22, 1
      %p192 = por %p190, %p191
      %p193 = scmp.ne.s32.totalorder %s182, %s183
      %p194 = scmp.eq.s32.totalorder %s22, 0
      %p195 = por %p193, %p194
      %p196 = scmp.ne.s32.totalorder %s182, %s183
      %p197 = scmp.eq.s32.totalorder %s23, 1
      %p198 = por %p196, %p197
      %p200 = scmp.ne.s32.totalorder %s183, %s199
      %p201 = scmp.eq.s32.totalorder %s23, 0
      %p202 = por %p200, %p201
      %p203 = scmp.le.s32.totalorder 1, %s17
      %p204 = scmp.lt.s32.totalorder %s17, 3
      %p205 = pnand %p203, %p204
      %p206 = pneg %p205
      // Predicated region
      $region9: #{tpu_custom_call.1} parent=5 // pred_check
        _
      $region10: #{tpu_custom_call.1} parent=5 // pred_check_branch
        %208 = sbr.rel (%p205) target = $region12
      $region11: #{tpu_custom_call.1} parent=5 // pred_region
        %s209 = ssub.s32 %s17, 1
        // Predicated region
        $region13: #{tpu_custom_call.1} parent=11 // pred_check
          %p210 = pneg %p64
        $region14: #{tpu_custom_call.1} parent=11 // pred_check_branch
          %212 = sbr.rel (%p210) target = $region16
        $region15: #{tpu_custom_call.1} parent=11 // pred_region
          _
        $region16: #{tpu_custom_call.1} parent=11 // pred_fallthru
          _
        // Predicated region
        $region17: #{tpu_custom_call.1} parent=11 // pred_check
          %p213 = pneg %p85
        $region18: #{tpu_custom_call.1} parent=11 // pred_check_branch
          %215 = sbr.rel (%p213) target = $region20
        $region19: #{tpu_custom_call.1} parent=11 // pred_region
          _
        $region20: #{tpu_custom_call.1} parent=11 // pred_fallthru
          _
        // Predicated region
        $region21: #{tpu_custom_call.1} parent=11 // pred_check
          %p216 = pneg %p106
        $region22: #{tpu_custom_call.1} parent=11 // pred_check_branch
          %218 = sbr.rel (%p216) target = $region24
        $region23: #{tpu_custom_call.1} parent=11 // pred_region
          _
        $region24: #{tpu_custom_call.1} parent=11 // pred_fallthru
          _
        // Predicated region
        $region25: #{tpu_custom_call.1} parent=11 // pred_check
          %p219 = pneg %p127
        $region26: #{tpu_custom_call.1} parent=11 // pred_check_branch
          %221 = sbr.rel (%p219) target = $region28
        $region27: #{tpu_custom_call.1} parent=11 // pred_region
          _
        $region28: #{tpu_custom_call.1} parent=11 // pred_fallthru
          _
        // Predicated region
        $region29: #{tpu_custom_call.1} parent=11 // pred_check
          %p222 = pneg %p148
        $region30: #{tpu_custom_call.1} parent=11 // pred_check_branch
          %224 = sbr.rel (%p222) target = $region32
        $region31: #{tpu_custom_call.1} parent=11 // pred_region
          _
        $region32: #{tpu_custom_call.1} parent=11 // pred_fallthru
          _
        // Predicated region
        $region33: #{tpu_custom_call.1} parent=11 // pred_check
          %p225 = pneg %p169
        $region34: #{tpu_custom_call.1} parent=11 // pred_check_branch
          %227 = sbr.rel (%p225) target = $region36
        $region35: #{tpu_custom_call.1} parent=11 // pred_region
          _
        $region36: #{tpu_custom_call.1} parent=11 // pred_fallthru
          _
      $region12: #{tpu_custom_call.1} parent=5 // pred_fallthru
        _
      %p228 = scmp.lt.s32.totalorder %s17, 2
      // Predicated region
      $region37: #{tpu_custom_call.1} parent=5 // pred_check
        %p229 = pneg %p228
      $region38: #{tpu_custom_call.1} parent=5 // pred_check_branch
        %231 = sbr.rel (%p229) target = $region40
      $region39: #{tpu_custom_call.1} parent=5 // pred_region
        // Predicated region
        $region41: #{tpu_custom_call.1} parent=39 // pred_check
          %p232 = pneg %p37
        $region42: #{tpu_custom_call.1} parent=39 // pred_check_branch
          %234 = sbr.rel (%p232) target = $region44
        $region43: #{tpu_custom_call.1} parent=39 // pred_region
          %s235 = smul.u32 2, %s17
          %p236 = scmp.lt.s32.totalorder %s235, 3
          %s237 = scalar_select %p236, %s235, 3
          %s238 = scalar_lea.vmem %s0, %s237
          %s239 = smul.u32 2, %s17
        $region44: #{tpu_custom_call.1} parent=39 // pred_fallthru
          _
      $region40: #{tpu_custom_call.1} parent=5 // pred_fallthru
        _
      %p240 = scmp.le.s32.totalorder 1, %s17
      %p241 = scmp.lt.s32.totalorder %s17, 3
      %p242 = pnand %p240, %p241
      %p243 = pneg %p242
      // Predicated region
      $region45: #{tpu_custom_call.1} parent=5 // pred_check
        _
      $region46: #{tpu_custom_call.1} parent=5 // pred_check_branch
        %245 = sbr.rel (%p242) target = $region48
      $region47: #{tpu_custom_call.1} parent=5 // pred_region
        %s246 = ssub.s32 %s17, 1
        %s247 = smul.u32 2, %s22
        %p248 = scmp.lt.s32.totalorder %s247, 3
        %s249 = scalar_select %p248, %s247, 3
        %s250 = scalar_lea.vmem %s0, %s249
        %p251 = pneg %p43
        %p252 = pneg %p40
        %p253 = pneg %p64
        %p254 = pneg %p61
        %p255 = pneg %p85
        %p256 = pneg %p82
        %p257 = pneg %p106
        %p258 = pneg %p103
        %p259 = pneg %p127
        %p260 = pneg %p124
        %p261 = pneg %p148
        %p262 = pneg %p145
        %p263 = pneg %p169
        %p264 = pneg %p166
        %p265 = pneg %p195
        %p266 = pneg %p192
        %s267 = sand.u32 %s182, 1
        %s268 = scalar_lea.sflag [#allocation4], %s267
        %s269 = sand.u32 %s182, 1
        %s270 = smul.addr %s269, 2
        %s271 = scalar_lea.vmem [#allocation3], %s270
        %s272 = smul.u32 2, %s22
        %p273 = scmp.lt.s32.totalorder %s272, 3
        %s274 = scalar_select %p273, %s272, 3
        %s275 = scalar_lea.vmem %s0, %s274
        %s276 = smul.u32 2, %s22
        %s277 = smul.u32 2, %s22
        %v278 = vld [vmem:[%s1] sm:$0xff]
        %v279 = vld [vmem:[%s1 + $0x8] sm:$0xff]
        %v280 = vld [vmem:[%s1 + $0x10] sm:$0xff]
        %v281 = vld [vmem:[%s1 + $0x18] sm:$0xff]
        %v282 = vld [vmem:[%s275] sm:$0x3]
        %284 = vset.pattern.permute.xlu0 0
        %285 = vperm.xlu0 %284, %v278
        %v286 = vpop.permute.xlu0 %285
        %289 = vset.pattern.permute.xlu0 0
        %290 = vperm.xlu0 %289, %v279
        %v291 = vpop.permute.xlu0 %290
        %294 = vset.pattern.permute.xlu0 0
        %295 = vperm.xlu0 %294, %v280
        %v296 = vpop.permute.xlu0 %295
        %299 = vset.pattern.permute.xlu0 0
        %300 = vperm.xlu0 %299, %v281
        %v301 = vpop.permute.xlu0 %300
        %v304 = vlaneseq
        %v305 = vshrl.u32 %v304, 7
        %v306 = vsub.s32 0, %v305
        %v307 = vrot.slane %v282, %v306
        %v308 = vlaneseq
        %v309 = vshrl.u32 %v308, 7
        %v310 = vsub.s32 1, %v309
        %v311 = vrot.slane %v282, %v310
        %v314 = vmul.f32 %v286, %v307
        %v315 = vmul.f32 %v286, %v311
        %v316 = vmul.f32 %v291, %v307
        %v317 = vmul.f32 %v291, %v311
        %v318 = vmul.f32 %v296, %v307
        %v319 = vmul.f32 %v296, %v311
        %v320 = vmul.f32 %v301, %v307
        %v321 = vmul.f32 %v301, %v311
        %v322 = vld [vmem:[%s2] sm:$0xff]
        %v323 = vld [vmem:[%s2 + $0x8] sm:$0xff]
        %v324 = vld [vmem:[%s2 + $0x10] sm:$0xff]
        %v325 = vld [vmem:[%s2 + $0x18] sm:$0xff]
        %327 = vset.pattern.permute.xlu0 0
        %328 = vperm.xlu0 %327, %v322
        %v329 = vpop.permute.xlu0 %328
        %332 = vset.pattern.permute.xlu0 0
        %333 = vperm.xlu0 %332, %v323
        %v334 = vpop.permute.xlu0 %333
        %337 = vset.pattern.permute.xlu0 0
        %338 = vperm.xlu0 %337, %v324
        %v339 = vpop.permute.xlu0 %338
        %342 = vset.pattern.permute.xlu0 0
        %343 = vperm.xlu0 %342, %v325
        %v344 = vpop.permute.xlu0 %343
        %v346 = vadd.f32 %v314, %v329
        %v347 = vadd.f32 %v315, %v329
        %v348 = vadd.f32 %v316, %v334
        %v349 = vadd.f32 %v317, %v334
        %v350 = vadd.f32 %v318, %v339
        %v351 = vadd.f32 %v319, %v339
        %v352 = vadd.f32 %v320, %v344
        %v353 = vadd.f32 %v321, %v344
        %v354 = vtanh.pop %v346
        %v355 = vtanh.pop %v347
        %v356 = vtanh.pop %v348
        %v357 = vtanh.pop %v349
        %v358 = vtanh.pop %v350
        %v359 = vtanh.pop %v351
        %v360 = vtanh.pop %v352
        %v361 = vtanh.pop %v353
        %v362 = vld [vmem:[%s3] sm:$0xff]
        %v363 = vld [vmem:[%s3 + $0x8] sm:$0xff]
        %v364 = vld [vmem:[%s3 + $0x10] sm:$0xff]
        %v365 = vld [vmem:[%s3 + $0x18] sm:$0xff]
        %v366 = vld [vmem:[%s4] sm:$0xff]
        %v367 = vld [vmem:[%s4 + $0x8] sm:$0xff]
        %v368 = vld [vmem:[%s4 + $0x10] sm:$0xff]
        %v369 = vld [vmem:[%s4 + $0x18] sm:$0xff]
        %371 = vset.pattern.permute.xlu0 0
        %372 = vperm.xlu0 %371, %v366
        %v373 = vpop.permute.xlu0 %372
        %376 = vset.pattern.permute.xlu0 0
        %377 = vperm.xlu0 %376, %v367
        %v378 = vpop.permute.xlu0 %377
        %381 = vset.pattern.permute.xlu0 0
        %382 = vperm.xlu0 %381, %v368
        %v383 = vpop.permute.xlu0 %382
        %386 = vset.pattern.permute.xlu0 0
        %387 = vperm.xlu0 %386, %v369
        %v388 = vpop.permute.xlu0 %387
        %vm390 = vcmask 261120
        %v392 = vsel %vm390, %v362, 0
        %v395 = vsel %vm390, %v363, 0
        %v398 = vsel %vm390, %v364, 0
        %v401 = vsel %vm390, %v365, 0
        %403 = vmatprep.subr.mxu0 0.0
        %404 = vmatpush1.msra.mxu0 0.0
        %405 = vmatprep.subr.mxu0 0.0
        %406 = vmatpush1.msra.mxu0 0.0
        %407 = vmatprep.subr.mxu0 0.0
        %408 = vmatpush1.msra.mxu0 0.0
        %409 = vmatprep.subr.mxu0 0.0
        %410 = vmatpush1.msra.mxu0 0.0
        %411 = vmatprep.subr.mxu0 0.0
        %412 = vmatpush1.msra.mxu0 0.0
        %413 = vmatprep.subr.mxu0 0.0
        %414 = vmatpush1.msra.mxu0 0.0
        %415 = vmatprep.subr.mxu0 0.0
        %416 = vmatpush1.msra.mxu0 0.0
        %417 = vmatprep.subr.mxu0 0.0
        %418 = vmatpush1.msra.mxu0 0.0
        %419 = vmatprep.subr.mxu0 0.0
        %420 = vmatpush1.msra.mxu0 0.0
        %421 = vmatprep.subr.mxu0 0.0
        %422 = vmatpush1.msra.mxu0 0.0
        %423 = vmatprep.subr.mxu0 0.0
        %424 = vmatpush1.msra.mxu0 0.0
        %425 = vmatprep.subr.mxu0 0.0
        %426 = vmatpush1.msra.mxu0 0.0
        %427 = vmatprep.subr.mxu0 %v361
        %428 = vmatpush1.msra.mxu0 %v360
        %429 = vmatprep.subr.mxu0 %v359
        %430 = vmatpush1.msra.mxu0 %v358
        %431 = vmatprep.subr.mxu0 %v357
        %432 = vmatpush1.msra.mxu0 %v356
        %433 = vmatprep.subr.mxu0 %v355
        %434 = vmatpush1.msra.mxu0 %v354
        %435 = vmatprep.subr.mxu0 0.0
        %436 = vmatpush2.msra.mxu0 0.0
        %437 = vmatprep.subr.mxu0 0.0
        %438 = vmatpush2.msra.mxu0 0.0
        %439 = vmatprep.subr.mxu0 0.0
        %440 = vmatpush2.msra.mxu0 0.0
        %441 = vmatprep.subr.mxu0 0.0
        %442 = vmatpush2.msra.mxu0 0.0
        %443 = vmatprep.subr.mxu0 0.0
        %444 = vmatpush2.msra.mxu0 0.0
        %445 = vmatprep.subr.mxu0 0.0
        %446 = vmatpush2.msra.mxu0 0.0
        %447 = vmatprep.subr.mxu0 0.0
        %448 = vmatpush2.msra.mxu0 0.0
        %449 = vmatprep.subr.mxu0 0.0
        %450 = vmatpush2.msra.mxu0 0.0
        %451 = vmatprep.subr.mxu0 0.0
        %452 = vmatpush2.msra.mxu0 0.0
        %453 = vmatprep.subr.mxu0 0.0
        %454 = vmatpush2.msra.mxu0 0.0
        %455 = vmatprep.subr.mxu0 0.0
        %456 = vmatpush2.msra.mxu0 0.0
        %457 = vmatprep.subr.mxu0 0.0
        %458 = vmatpush2.msra.mxu0 0.0
        %459 = vmatprep.subr.mxu0 0.0
        %460 = vmatpush2.msra.mxu0 0.0
        %461 = vmatprep.subr.mxu0 0.0
        %462 = vmatpush2.msra.mxu0 0.0
        %463 = vmatprep.subr.mxu0 0.0
        %464 = vmatpush2.msra.mxu0 0.0
        %465 = vmatprep.subr.mxu0 0.0
        %466 = vmatpush2.msra.mxu0 0.0
        %467 = vmatprep.mubr.f32.mxu0 0.0
        %468 = vmatmul.mubr.f32.gmra.mxu0 %v392
        %v469 = vpop.f32.mrf.mxu0
        %v470 = vadd.f32 %v373, %v469
        %v471 = vpop.f32.mrf.mxu0
        %v472 = vadd.f32 %v373, %v471
        %473 = vmatprep.mubr.f32.mxu0 0.0
        %474 = vmatmul.mubr.f32.gmra.mxu0 %v395
        %v475 = vpop.f32.mrf.mxu0
        %v476 = vadd.f32 %v378, %v475
        %v477 = vpop.f32.mrf.mxu0
        %v478 = vadd.f32 %v378, %v477
        %479 = vmatprep.mubr.f32.mxu0 0.0
        %480 = vmatmul.mubr.f32.gmra.mxu0 %v398
        %v481 = vpop.f32.mrf.mxu0
        %v482 = vadd.f32 %v383, %v481
        %v483 = vpop.f32.mrf.mxu0
        %v484 = vadd.f32 %v383, %v483
        %485 = vmatprep.mubr.f32.mxu0 0.0
        %486 = vmatmul.mubr.f32.gmra.mxu0 %v401
        %v487 = vpop.f32.mrf.mxu0
        %v488 = vadd.f32 %v388, %v487
        %v489 = vpop.f32.mrf.mxu0
        %v490 = vadd.f32 %v388, %v489
        %491 = vdwg.mxu0
        %v492 = vtanh.pop %v470
        %v493 = vtanh.pop %v472
        %v494 = vtanh.pop %v476
        %v495 = vtanh.pop %v478
        %v496 = vtanh.pop %v482
        %v497 = vtanh.pop %v484
        %v498 = vtanh.pop %v488
        %v499 = vtanh.pop %v490
        %v500 = vld [vmem:[%s5] sm:$0x1]
        %s501 = sld [smem:[#allocation2]]
        %v502 = vstv %s501
        %v504 = vsel %vm390, %v500, 0
        %506 = vmatprep.subr.mxu0 0.0
        %507 = vmatpush1.msra.mxu0 0.0
        %508 = vmatprep.subr.mxu0 0.0
        %509 = vmatpush1.msra.mxu0 0.0
        %510 = vmatprep.subr.mxu0 0.0
        %511 = vmatpush1.msra.mxu0 0.0
        %512 = vmatprep.subr.mxu0 0.0
        %513 = vmatpush1.msra.mxu0 0.0
        %514 = vmatprep.subr.mxu0 0.0
        %515 = vmatpush1.msra.mxu0 0.0
        %516 = vmatprep.subr.mxu0 0.0
        %517 = vmatpush1.msra.mxu0 0.0
        %518 = vmatprep.subr.mxu0 0.0
        %519 = vmatpush1.msra.mxu0 0.0
        %520 = vmatprep.subr.mxu0 0.0
        %521 = vmatpush1.msra.mxu0 0.0
        %522 = vmatprep.subr.mxu0 0.0
        %523 = vmatpush1.msra.mxu0 0.0
        %524 = vmatprep.subr.mxu0 0.0
        %525 = vmatpush1.msra.mxu0 0.0
        %526 = vmatprep.subr.mxu0 0.0
        %527 = vmatpush1.msra.mxu0 0.0
        %528 = vmatprep.subr.mxu0 0.0
        %529 = vmatpush1.msra.mxu0 0.0
        %530 = vmatprep.subr.mxu0 %v499
        %531 = vmatpush1.msra.mxu0 %v498
        %532 = vmatprep.subr.mxu0 %v497
        %533 = vmatpush1.msra.mxu0 %v496
        %534 = vmatprep.subr.mxu0 %v495
        %535 = vmatpush1.msra.mxu0 %v494
        %536 = vmatprep.subr.mxu0 %v493
        %537 = vmatpush1.msra.mxu0 %v492
        %538 = vmatprep.subr.mxu0 0.0
        %539 = vmatpush2.msra.mxu0 0.0
        %540 = vmatprep.subr.mxu0 0.0
        %541 = vmatpush2.msra.mxu0 0.0
        %542 = vmatprep.subr.mxu0 0.0
        %543 = vmatpush2.msra.mxu0 0.0
        %544 = vmatprep.subr.mxu0 0.0
        %545 = vmatpush2.msra.mxu0 0.0
        %546 = vmatprep.subr.mxu0 0.0
        %547 = vmatpush2.msra.mxu0 0.0
        %548 = vmatprep.subr.mxu0 0.0
        %549 = vmatpush2.msra.mxu0 0.0
        %550 = vmatprep.subr.mxu0 0.0
        %551 = vmatpush2.msra.mxu0 0.0
        %552 = vmatprep.subr.mxu0 0.0
        %553 = vmatpush2.msra.mxu0 0.0
        %554 = vmatprep.subr.mxu0 0.0
        %555 = vmatpush2.msra.mxu0 0.0
        %556 = vmatprep.subr.mxu0 0.0
        %557 = vmatpush2.msra.mxu0 0.0
        %558 = vmatprep.subr.mxu0 0.0
        %559 = vmatpush2.msra.mxu0 0.0
        %560 = vmatprep.subr.mxu0 0.0
        %561 = vmatpush2.msra.mxu0 0.0
        %562 = vmatprep.subr.mxu0 0.0
        %563 = vmatpush2.msra.mxu0 0.0
        %564 = vmatprep.subr.mxu0 0.0
        %565 = vmatpush2.msra.mxu0 0.0
        %566 = vmatprep.subr.mxu0 0.0
        %567 = vmatpush2.msra.mxu0 0.0
        %568 = vmatprep.subr.mxu0 0.0
        %569 = vmatpush2.msra.mxu0 0.0
        %570 = vmatprep.mubr.f32.mxu0 0.0
        %571 = vmatmul.mubr.f32.gmra.mxu0 %v504
        %v572 = vpop.f32.mrf.mxu0
        %v573 = vadd.f32 %v502, %v572
        %v574 = vpop.f32.mrf.mxu0
        %v575 = vadd.f32 %v502, %v574
        %576 = vdwg.mxu0
        %v579 = vcombine.low %v573, %v575
        %v581 = vunpack.c.l.s4 1966171168
        %v582 = vunpack.c.0.s8 %v581
        %v583 = vlaneseq
        %v584 = vshrl.u32 %v583, 7
        %v585 = vsub.s32 %v582, %v584
        %v586 = vrot.slane %v579, %v585
        %v588 = vunpack.c.l.s4 1966171168
        %v589 = vunpack.c.0.s8 %v588
        %v590 = vlaneseq
        %v591 = vshrl.u32 %v590, 7
        %v592 = vsub.s32 %v589, %v591
        %v593 = vrot.slane %v586, %v592
        %v595 = vlaneseq
        %vm596 = vcmp.ge.s32.totalorder %v595, 0
        %vm597 = vcmp.lt.s32.totalorder %v595, 256
        %vm598 = vmand %vm596, %vm597
        %599 = vst.msk [vmem:[%s271] sm:$0x3] %vm598, %v593
        %s600 = sand.u32 %s182, 1
        %s601 = scalar_lea.sflag [#allocation4], %s600
        %s602 = sand.u32 %s182, 1
        %s603 = smul.addr %s602, 2
        %s604 = scalar_lea.vmem [#allocation3], %s603
        // Predicated region
        $region49: #{tpu_custom_call.1} parent=47 // pred_check
          %p605 = pneg %p192
        $region50: #{tpu_custom_call.1} parent=47 // pred_check_branch
          %607 = sbr.rel (%p605) target = $region52
        $region51: #{tpu_custom_call.1} parent=47 // pred_region
          %s608 = smul.u32 2, %s22
          %s610 = ssub.s32 32, 32
          %611 = vsyncadd %s601, %s610
          %s612 = smul.addr %s608, 16
          %s613 = scalar_lea.hbm %s7, %s612
          %s615 = sshll.u32 %s604, 4
          %s616 = int_to_ptr.vmem [resolvable:$true] %s615
          %618 = dma.vmem_to_hbm [thread:$0]  %s616, 32, %s613, %s601
        $region52: #{tpu_custom_call.1} parent=47 // pred_fallthru
          _
      $region48: #{tpu_custom_call.1} parent=5 // pred_fallthru
        _
      %p619 = scmp.le.s32.totalorder 2, %s17
      // Predicated region
      $region53: #{tpu_custom_call.1} parent=5 // pred_check
        %p620 = pneg %p619
      $region54: #{tpu_custom_call.1} parent=5 // pred_check_branch
        %622 = sbr.rel (%p620) target = $region56
      $region55: #{tpu_custom_call.1} parent=5 // pred_region
        %s623 = ssub.s32 %s17, 2
        // Predicated region
        $region57: #{tpu_custom_call.1} parent=55 // pred_check
          %p624 = pneg %p198
        $region58: #{tpu_custom_call.1} parent=55 // pred_check_branch
          %626 = sbr.rel (%p624) target = $region60
        $region59: #{tpu_custom_call.1} parent=55 // pred_region
          %s627 = sand.u32 %s183, 1
          %s628 = scalar_lea.sflag [#allocation4], %s627
          %s629 = sand.u32 %s183, 1
          %s630 = smul.addr %s629, 2
          %s631 = scalar_lea.vmem [#allocation3], %s630
          %632 = dma.done %s628, 32
        $region60: #{tpu_custom_call.1} parent=55 // pred_fallthru
          _
      $region56: #{tpu_custom_call.1} parent=5 // pred_fallthru
        _
    $region6: #{tpu_custom_call.1} parent=1 // loop_footer
      %s21 = sadd.s32 1, %s17
    $region7: #{tpu_custom_call.1} parent=1 // loop_footer_branch
      %16 = sbr.rel target = $region3
    $region8: #{tpu_custom_call.1} parent=1 // loop_exit
      _
    %633 = vsyncpa [#allocation4], 1
    %s634 = scalar_lea.sflag [#allocation4], 1
    %635 = vsyncpa %s634, 1

</llo_original>
